<compile_context>
chip_gen: v6e
topology: v6e:2x2x1
jax: 0.10.0
libtpu: 0.0.40
codegen_flags: <defaults>
</compile_context>

<pallas_src>
import functools
import math

import jax
import jax.numpy as jnp
from jax.experimental import pallas as pl
from jax.experimental.pallas import tpu as pltpu


def _pick_tile(dim, pref, align):
    """Largest divisor of `dim` that is <= pref and `align`-aligned.

    Falls back to the full dim (always a legal block) only if no aligned
    divisor exists — never produces an oversized tile.
    """
    if dim <= pref:
        return dim
    for t in range(pref, 0, -1):
        if dim % t == 0 and t % align == 0:
            return t
    return dim


# ---------------------------------------------------------------------------
# Planar tiled linear: out[p] = x @ w[p] + b[p]   (p = output plane)
#   x: (M, K), w: (P, K, N), b: (P, 1, N) -> out: (P, M, N)
# Used with P=3 for the fused QKV projection (planes = q/k/v) and P=1 for the
# output projection.  bf16/f32 operands, f32 VMEM accumulator, lane-dense
# (tm, tn) stores.
# ---------------------------------------------------------------------------
def _linear_kernel(x_ref, w_ref, b_ref, o_ref, acc_ref):
    k = pl.program_id(3)

    @pl.when(k == 0)
    def _():
        acc_ref[...] = jnp.zeros_like(acc_ref)

    acc_ref[...] += jnp.dot(x_ref[...], w_ref[...],
                            preferred_element_type=jnp.float32)

    @pl.when(k == pl.num_programs(3) - 1)
    def _():
        # Single lane-dense full-width store per output tile.
        o_ref[...] = (acc_ref[...] + b_ref[...]).astype(o_ref.dtype)


def planar_linear(x, w, b, *, tm=512, tn=512, tk=512):
    M, K = x.shape
    P, K2, N = w.shape
    assert K == K2 and b.shape == (P, 1, N)
    tm = _pick_tile(M, tm, 8)
    tn = _pick_tile(N, tn, 128)
    tk = _pick_tile(K, tk, 128)

    return pl.pallas_call(
        _linear_kernel,
        out_shape=jax.ShapeDtypeStruct((P, M, N), x.dtype),
        grid_spec=pltpu.PrefetchScalarGridSpec(
            num_scalar_prefetch=0,
            grid=(P, M // tm, N // tn, K // tk),
            in_specs=[
                pl.BlockSpec((tm, tk), lambda p, i, j, k: (i, k)),
                pl.BlockSpec((None, tk, tn), lambda p, i, j, k: (p, k, j)),
                pl.BlockSpec((None, 1, tn), lambda p, i, j, k: (p, 0, j)),
            ],
            out_specs=pl.BlockSpec((None, tm, tn),
                                   lambda p, i, j, k: (p, i, j)),
            scratch_shapes=[pltpu.VMEM((tm, tn), jnp.float32)],
        ),
        compiler_params=pltpu.CompilerParams(
            dimension_semantics=("parallel", "parallel", "parallel",
                                 "arbitrary"),
            vmem_limit_bytes=32 * 1024 * 1024),
    )(x, w, b)


# ---------------------------------------------------------------------------
# Causal flash attention, all heads of one query block per grid step.
#   qkv: (3, B, T, C) planar layout (plane 0/1/2 = q/k/v, heads packed in C)
#   out: (B, T, C)   head-major merged layout (ready for the projection)
# ---------------------------------------------------------------------------
def _flash_kernel(q_ref, k_ref, v_ref, o_ref, m_sc, l_sc, acc_sc, *,
                  sm_scale, n_head, head_dim, block_q, block_k):
    qi = pl.program_id(1)
    ki = pl.program_id(2)
    q_start = qi * block_q
    k_start = ki * block_k

    @pl.when(ki == 0)
    def _():
        m_sc[...] = jnp.full_like(m_sc, -jnp.inf)
        l_sc[...] = jnp.zeros_like(l_sc)
        acc_sc[...] = jnp.zeros_like(acc_sc)

    def process(masked):
        # Keep operands in the model dtype (bf16/f32); MXU accumulates in f32.
        q_all = q_ref[...] * sm_scale          # scale q once, not the scores
        k_all = k_ref[...]
        v_all = v_ref[...]
        if masked:
            row = q_start + jax.lax.broadcasted_iota(
                jnp.int32, (block_q, block_k), 0)
            col = k_start + jax.lax.broadcasted_iota(
                jnp.int32, (block_q, block_k), 1)
            causal = col <= row
        for h in range(n_head):                # fold all heads into one step
            sl = slice(h * head_dim, (h + 1) * head_dim)
            q_h = q_all[:, sl]
            k_h = k_all[:, sl]
            v_h = v_all[:, sl]
            s = jax.lax.dot_general(
                q_h, k_h, (((1,), (1,)), ((), ())),
                preferred_element_type=jnp.float32)        # (bq, bk)
            if masked:
                s = jnp.where(causal, s, -jnp.inf)
            m_prev = m_sc[h]                                # (bq, 1)
            m_new = jnp.maximum(m_prev, s.max(axis=-1, keepdims=True))
            alpha = jnp.exp(m_prev - m_new)
            p = jnp.exp(s - m_new)
            l_sc[h] = alpha * l_sc[h] + p.sum(axis=-1, keepdims=True)
            acc_sc[:, sl] = alpha * acc_sc[:, sl] + jnp.dot(
                p.astype(v_h.dtype), v_h, preferred_element_type=jnp.float32)
            m_sc[h] = m_new

    # Strictly below the diagonal -> no masking needed at all.
    below_diag = (k_start + block_k - 1) <= q_start
    # Crosses the diagonal -> mask.  Fully above -> skip (and the clamped
    # index maps mean no new K/V DMA was issued for this step either).
    crosses = jnp.logical_and(k_start <= q_start + block_q - 1,
                              jnp.logical_not(below_diag))

    @pl.when(below_diag)
    def _():
        process(masked=False)

    @pl.when(crosses)
    def _():
        process(masked=True)

    @pl.when(ki == pl.num_programs(2) - 1)
    def _():
        for h in range(n_head):
            sl = slice(h * head_dim, (h + 1) * head_dim)
            inv = pl.reciprocal(l_sc[h], approx=True)       # EUP, not VALU
            o_ref[:, sl] = (acc_sc[:, sl] * inv).astype(o_ref.dtype)


def flash_attention_causal(qkv, *, n_head, sm_scale, block_q=128, block_k=256):
    _, B, T, C = qkv.shape
    assert C % n_head == 0
    head_dim = C // n_head
    block_q = _pick_tile(T, block_q, 8)
    block_k = _pick_tile(T, block_k, 8)
    n_q = T // block_q
    n_k = T // block_k

    def q_map(b, qi, ki):
        return (0, b, qi, 0)

    def make_kv_map(plane):
        def kv_map(b, qi, ki):
            # Clamp to the diagonal block: above-diagonal steps reuse the
            # previous block -> no DMA for fully-masked work.
            diag = (qi * block_q + block_q - 1) // block_k
            return (plane, b, jnp.minimum(ki, diag), 0)
        return kv_map

    kernel = functools.partial(
        _flash_kernel, sm_scale=sm_scale, n_head=n_head, head_dim=head_dim,
        block_q=block_q, block_k=block_k)

    return pl.pallas_call(
        kernel,
        out_shape=jax.ShapeDtypeStruct((B, T, C), qkv.dtype),
        grid_spec=pltpu.PrefetchScalarGridSpec(
            num_scalar_prefetch=0,
            grid=(B, n_q, n_k),
            in_specs=[
                pl.BlockSpec((None, None, block_q, C), q_map),
                pl.BlockSpec((None, None, block_k, C), make_kv_map(1)),
                pl.BlockSpec((None, None, block_k, C), make_kv_map(2)),
            ],
            out_specs=pl.BlockSpec((None, block_q, C),
                                   lambda b, qi, ki: (b, qi, 0)),
            scratch_shapes=[
                pltpu.VMEM((n_head, block_q, 1), jnp.float32),   # running max
                pltpu.VMEM((n_head, block_q, 1), jnp.float32),   # running denom
                pltpu.VMEM((block_q, C), jnp.float32),           # output acc
            ],
        ),
        compiler_params=pltpu.CompilerParams(
            dimension_semantics=("parallel", "parallel", "arbitrary"),
            vmem_limit_bytes=32 * 1024 * 1024),
    )(qkv, qkv, qkv)


# ---------------------------------------------------------------------------
# Full module forward
# ---------------------------------------------------------------------------
def causal_self_attention(x, w_attn, b_attn, w_proj, b_proj, *, n_head):
    B, T, C = x.shape
    assert C % n_head == 0
    hd = C // n_head
    M = B * T

    # One-time weight re-layouts (parameters only — activations are never
    # transposed outside the kernels).
    w_qkv = w_attn.reshape(C, 3, C).transpose(1, 0, 2)   # (3, C, C)
    b_qkv = b_attn.reshape(3, 1, C)
    w_p = w_proj.reshape(1, C, C)
    b_p = b_proj.reshape(1, 1, C)

    x2 = x.reshape(M, C)
    qkv = planar_linear(x2, w_qkv, b_qkv)                # (3, M, C), planar
    qkv = qkv.reshape(3, B, T, C)                        # metadata only

    y = flash_attention_causal(qkv, n_head=n_head,
                               sm_scale=1.0 / math.sqrt(hd))   # (B, T, C)

    out = planar_linear(y.reshape(M, C), w_p, b_p)[0]    # (M, C)
    # TODO(synk): attn_dropout / resid_dropout omitted (inference path, p=0).
    return out.reshape(B, T, C)


# ---------------------------------------------------------------------------
# Pure-JAX reference (matches the PyTorch forward, eval mode)
# ---------------------------------------------------------------------------
def _reference(x, w_attn, b_attn, w_proj, b_proj, n_head):
    B, T, C = x.shape
    hd = C // n_head
    qkv = x @ w_attn + b_attn
    q, k, v = jnp.split(qkv, 3, axis=-1)
    q = q.reshape(B, T, n_head, hd).transpose(0, 2, 1, 3)
    k = k.reshape(B, T, n_head, hd).transpose(0, 2, 1, 3)
    v = v.reshape(B, T, n_head, hd).transpose(0, 2, 1, 3)
    att = jnp.einsum('bhqd,bhkd->bhqk', q, k) / math.sqrt(hd)
    mask = jnp.tril(jnp.ones((T, T), dtype=bool))
    att = jnp.where(mask[None, None], att, -jnp.inf)
    att = jax.nn.softmax(att, axis=-1)
    y = jnp.einsum('bhqk,bhkd->bhqd', att, v)
    y = y.transpose(0, 2, 1, 3).reshape(B, T, C)
    return y @ w_proj + b_proj


if __name__ == "__main__":
    B, T = 2, 8
    n_embed, n_head = 32, 4

    key = jax.random.PRNGKey(0)
    kx, kw1, kb1, kw2, kb2 = jax.random.split(key, 5)
    x = jax.random.normal(kx, (B, T, n_embed), dtype=jnp.float32)
    w_attn = jax.random.normal(kw1, (n_embed, 3 * n_embed), jnp.float32) * 0.1
    b_attn = jax.random.normal(kb1, (3 * n_embed,), jnp.float32) * 0.1
    w_proj = jax.random.normal(kw2, (n_embed, n_embed), jnp.float32) * 0.1
    b_proj = jax.random.normal(kb2, (n_embed,), jnp.float32) * 0.1

    out = causal_self_attention(x, w_attn, b_attn, w_proj, b_proj,
                                n_head=n_head)
    out = jax.block_until_ready(out)

    ref = _reference(x, w_attn, b_attn, w_proj, b_proj, n_head)
    assert out.shape == (B, T, n_embed)
    assert jnp.allclose(out, ref, atol=2e-3, rtol=2e-3), \
        float(jnp.max(jnp.abs(out - ref)))

    print("KERNEL_OK")
</pallas_src>

<mosaic_0001>
module attributes {stable_mosaic.version = 11 : i64} {
  func.func @_linear_kernel(%arg0: i32, %arg1: i32, %arg2: i32, %arg3: i32, %arg4: memref<16x32xf32, #tpu.memory_space<vmem>>, %arg5: memref<1x32x32xf32, #tpu.memory_space<vmem>>, %arg6: memref<1x1x32xf32, #tpu.memory_space<vmem>>, %arg7: memref<1x16x32xf32, #tpu.memory_space<vmem>>, %arg8: memref<16x32xf32, #tpu.memory_space<vmem>>) attributes {dimension_semantics = [#tpu.dimension_semantics<parallel>, #tpu.dimension_semantics<parallel>, #tpu.dimension_semantics<parallel>, #tpu.dimension_semantics<arbitrary>], iteration_bounds = array<i64: 3, 1, 1, 1>, scalar_prefetch = 0 : i64, scratch_operands = 1 : i64, tpu.core_type = #tpu.core_type<tc>, window_params = [{transform_indices = @transform_0, window_bounds = array<i64: 16, 32>}, {transform_indices = @transform_1, window_bounds = array<i64: 1, 32, 32>}, {transform_indices = @transform_2, window_bounds = array<i64: 1, 1, 32>}, {transform_indices = @transform_3, window_bounds = array<i64: 1, 16, 32>}]} {
    %c0_i32 = arith.constant 0 : i32
    %0 = arith.cmpi eq, %arg3, %c0_i32 : i32
    %1 = arith.extui %0 : i1 to i32
    %c0_i32_0 = arith.constant 0 : i32
    %2 = arith.cmpi ne, %1, %c0_i32_0 : i32
    scf.if %2 {
      %cst_11 = arith.constant 0.000000e+00 : f32
      %13 = vector.broadcast %cst_11 : f32 to vector<16x32xf32>
      %c0_12 = arith.constant 0 : index
      %c0_13 = arith.constant 0 : index
      %14 = vector.load %arg8[%c0_12, %c0_13] : memref<16x32xf32, #tpu.memory_space<vmem>>, vector<16x32xf32>
      tpu.vector_store %arg8[%c0_12, %c0_13], %13 {strides = array<i32>} : memref<16x32xf32, #tpu.memory_space<vmem>>, vector<16x32xf32>,
    } else {
    }
    %c0 = arith.constant 0 : index
    %c0_1 = arith.constant 0 : index
    %3 = vector.load %arg8[%c0, %c0_1] : memref<16x32xf32, #tpu.memory_space<vmem>>, vector<16x32xf32>
    %c0_2 = arith.constant 0 : index
    %c0_3 = arith.constant 0 : index
    %4 = vector.load %arg4[%c0_2, %c0_3] : memref<16x32xf32, #tpu.memory_space<vmem>>, vector<16x32xf32>
    %c0_4 = arith.constant 0 : index
    %c0_5 = arith.constant 0 : index
    %c0_6 = arith.constant 0 : index
    %5 = vector.load %arg5[%c0_4, %c0_5, %c0_6] : memref<1x32x32xf32, #tpu.memory_space<vmem>>, vector<1x32x32xf32>
    %6 = vector.shape_cast %5 : vector<1x32x32xf32> to vector<32x32xf32>
    %cst = arith.constant dense<0.000000e+00> : vector<16x32xf32>
    %7 = tpu.matmul %4, %6, %cst {dimension_numbers = #tpu.dot_dimension_numbers<[1], [0], [0], [1], [0, 0, 1, 1], [], []>} : vector<16x32xf32>, vector<32x32xf32>, vector<16x32xf32> -> vector<16x32xf32>
    %8 = arith.addf %3, %7 : vector<16x32xf32>
    %c0_7 = arith.constant 0 : index
    %c0_8 = arith.constant 0 : index
    %9 = vector.load %arg8[%c0_7, %c0_8] : memref<16x32xf32, #tpu.memory_space<vmem>>, vector<16x32xf32>
    tpu.vector_store %arg8[%c0_7, %c0_8], %8 {strides = array<i32>} : memref<16x32xf32, #tpu.memory_space<vmem>>, vector<16x32xf32>,
    %c0_i32_9 = arith.constant 0 : i32
    %10 = arith.cmpi eq, %arg3, %c0_i32_9 : i32
    %11 = arith.extui %10 : i1 to i32
    %c0_i32_10 = arith.constant 0 : i32
    %12 = arith.cmpi ne, %11, %c0_i32_10 : i32
    scf.if %12 {
      %c0_11 = arith.constant 0 : index
      %c0_12 = arith.constant 0 : index
      %13 = vector.load %arg8[%c0_11, %c0_12] : memref<16x32xf32, #tpu.memory_space<vmem>>, vector<16x32xf32>
      %c0_13 = arith.constant 0 : index
      %c0_14 = arith.constant 0 : index
      %c0_15 = arith.constant 0 : index
      %14 = vector.load %arg6[%c0_13, %c0_14, %c0_15] : memref<1x1x32xf32, #tpu.memory_space<vmem>>, vector<1x1x32xf32>
      %15 = vector.shape_cast %14 : vector<1x1x32xf32> to vector<1x32xf32>
      %16 = vector.broadcast %15 : vector<1x32xf32> to vector<16x32xf32>
      %17 = arith.addf %13, %16 : vector<16x32xf32>
      %c0_16 = arith.constant 0 : index
      %c0_17 = arith.constant 0 : index
      %c0_18 = arith.constant 0 : index
      %18 = vector.load %arg7[%c0_16, %c0_17, %c0_18] : memref<1x16x32xf32, #tpu.memory_space<vmem>>, vector<1x16x32xf32>
      %19 = vector.shape_cast %18 : vector<1x16x32xf32> to vector<16x32xf32>
      %20 = vector.shape_cast %17 : vector<16x32xf32> to vector<1x16x32xf32>
      tpu.vector_store %arg7[%c0_16, %c0_17, %c0_18], %20 {strides = array<i32>} : memref<1x16x32xf32, #tpu.memory_space<vmem>>, vector<1x16x32xf32>,
    } else {
    }
    return
  }
  func.func @transform_0(%arg0: i32, %arg1: i32, %arg2: i32, %arg3: i32) -> (i32, i32) {
    %c0_i32 = arith.constant 0 : i32
    return %arg1, %arg3 : i32, i32
  }
  func.func @transform_1(%arg0: i32, %arg1: i32, %arg2: i32, %arg3: i32) -> (i32, i32, i32) {
    %c0_i32 = arith.constant 0 : i32
    return %arg0, %arg3, %arg2 : i32, i32, i32
  }
  func.func @transform_2(%arg0: i32, %arg1: i32, %arg2: i32, %arg3: i32) -> (i32, i32, i32) {
    %c0_i32 = arith.constant 0 : i32
    %c0_i32_0 = arith.constant 0 : i32
    return %arg0, %c0_i32, %arg2 : i32, i32, i32
  }
  func.func @transform_3(%arg0: i32, %arg1: i32, %arg2: i32, %arg3: i32) -> (i32, i32, i32) {
    %c0_i32 = arith.constant 0 : i32
    return %arg0, %arg1, %arg2 : i32, i32, i32
  }
}

</mosaic_0001>

<llo_original>
// kernel: tpu_custom_call.1
$region0: #{tpu_custom_call.1}
  #allocation0 [shape = 'u32[]', space=smem, size = 0x4, offset = 0x4, fixed_abs, tag = 'smem constant byte address 0x4 - core index']
  #allocation1 [shape = 'u32[144,128]{1,0:T(1,128)}', space=vmem, size = 0x12000, scoped, tag = 'internal scratch']
  #allocation2 [shape = 'f32[16,32]{1,0:T(8,128)}', space=vmem, size = 0x2000, scoped, tag = 'scratch operand']
  %s0 = inlined_call_operand.hbm [shape: f32[16,32], index: 0, kind: input, shape index: {}]
  %s1 = inlined_call_operand.hbm [shape: f32[3,32,32], index: 1, kind: input, shape index: {}]
  %s2 = inlined_call_operand.vmem [shape: f32[3,1,32], index: 2, kind: input, shape index: {}]
  %s3 = inlined_call_operand.hbm [shape: f32[3,16,32], index: 3, kind: output, shape index: {}]
  %s4 = sld [smem:[#allocation0]]
  $region61: #{tpu_custom_call.1} parent=0
    _
  %s6 = ssub.s32 1, %s4
  %s7 = scalar_select 0, %s6, %s4
  $region1: #{tpu_custom_call.1} parent=0
    #allocation3 [shape = 'u8[8192]{0}', space=vmem, size = 0x2000, scoped, tag = 'input window, operand 0, single buffered']
    #allocation4 [shape = 's32[2]{0}', space=sflag, size = 0x8, scoped, tag = 'scoped memory for tpu_custom_call.1']
    #allocation5 [shape = 's32[2]{0}', space=sflag, size = 0x8, scoped, tag = 'scoped memory for tpu_custom_call.1']
    #allocation6 [shape = 'u8[32768]{0}', space=vmem, size = 0x8000, scoped, tag = 'input window, operand 1']
    #allocation7 [shape = 's32[2]{0}', space=sflag, size = 0x8, scoped, tag = 'scoped memory for tpu_custom_call.1']
    #allocation8 [shape = 'u8[16384]{0}', space=vmem, size = 0x4000, scoped, tag = 'output window, operand 0']
    %8 = vsyncpa [#allocation4], 0
    %9 = vsyncpa [#allocation7], 0
    %s10 = scalar_lea.sflag [#allocation7], 1
    %11 = vsyncpa %s10, 0
    %12 = vsyncpa [#allocation5], 0
    %s13 = scalar_lea.sflag [#allocation5], 1
    %14 = vsyncpa %s13, 0
    loop: start=0, step=1, limit=5
    $region2: #{tpu_custom_call.1} parent=1 // loop_pre_header
      _
    $region3: #{tpu_custom_call.1} parent=1 // loop_header
      %s16 = sphi 0, %s20
      %p17 = scmp.ge.s32.totalorder %s16, 5
      %s23 = sphi 0, %s49
      %s24 = sphi 0, %s45
      %s25 = sphi 0, %s41
      %s26 = sphi 0, %s37
      %s27 = sphi 0, %s23
      %s28 = sphi 0, %s24
      %s29 = sphi 0, %s25
      %s30 = sphi 0, %s26
      %s31 = sphi 0, %s27
      %s32 = sphi 0, %s28
      %s33 = sphi 0, %s29
      %s34 = sphi 0, %s30
      %s54 = sphi 0, %s56
      %s57 = sphi 0, %s54
      %s58 = sphi 0, %s57
      %s74 = sphi 0, %s58
      %s84 = sphi 0, %s86
      %s87 = sphi 0, %s84
      %s88 = sphi 0, %s87
      %s104 = sphi 0, %s88
      %s112 = sphi 0, %s114
      %s115 = sphi 0, %s112
      %s116 = sphi 0, %s115
      %s132 = sphi 0, %s116
      %s142 = sphi 0, %s144
      %s145 = sphi 0, %s142
      %s146 = sphi 0, %s145
      %s162 = sphi 0, %s146
    $region4: #{tpu_custom_call.1} parent=1 // loop_header_branch
      %19 = sbr.rel (%p17) target = $region8
    $region5: #{tpu_custom_call.1} parent=1 // loop_body
      %s21 = ssub.s32 %s16, 1
      %s22 = ssub.s32 %s16, 2
      %s35 = sadd.s32 1, %s26
      %p36 = scmp.ge.s32.totalorder %s35, 1
      %s37 = scalar_select %p36, 0, %s35
      %s38 = sadd.s32 1, %s25
      %s39 = scalar_select %p36, %s38, %s25
      %p40 = scmp.ge.s32.totalorder %s39, 1
      %s41 = scalar_select %p40, 0, %s39
      %s42 = sadd.s32 1, %s24
      %s43 = scalar_select %p40, %s42, %s24
      %p44 = scmp.ge.s32.totalorder %s43, 1
      %s45 = scalar_select %p44, 0, %s43
      %s46 = sadd.s32 1, %s23
      %s47 = scalar_select %p44, %s46, %s23
      %p48 = scmp.ge.s32.totalorder %s47, 3
      %s49 = scalar_select %p48, 0, %s47
      %s50 = ssub.s32 %s24, %s45
      %s51 = ssub.s32 %s26, %s37
      %s52 = sor.u32 %s50, %s51
      %p53 = scmp.eq.s32.totalorder %s52, 0
      %s55 = sadd.s32 %s54, 1
      %s56 = scalar_select %p53, %s54, %s55
      %p59 = pneg %p53
      %p60 = scmp.eq.s32.totalorder %s16, 2
      %p61 = por %p59, %p60
      %p62 = scmp.ne.s32.totalorder %s54, %s57
      %p63 = scmp.eq.s32.totalorder %s16, 0
      %p64 = por %p62, %p63
      %p65 = scmp.ne.s32.totalorder %s54, %s57
      %p66 = scmp.eq.s32.totalorder %s21, 2
      %p67 = por %p65, %p66
      %p68 = scmp.ne.s32.totalorder %s57, %s58
      %p69 = scmp.eq.s32.totalorder %s21, 0
      %p70 = por %p68, %p69
      %p71 = scmp.ne.s32.totalorder %s57, %s58
      %p72 = scmp.eq.s32.totalorder %s22, 2
      %p73 = por %p71, %p72
      %p75 = scmp.ne.s32.totalorder %s58, %s74
      %p76 = scmp.eq.s32.totalorder %s22, 0
      %p77 = por %p75, %p76
      %s78 = ssub.s32 %s23, %s49
      %s79 = ssub.s32 %s26, %s37
      %s80 = sor.u32 %s78, %s79
      %s81 = ssub.s32 %s25, %s41
      %s82 = sor.u32 %s80, %s81
      %p83 = scmp.eq.s32.totalorder %s82, 0
      %s85 = sadd.s32 %s84, 1
      %s86 = scalar_select %p83, %s84, %s85
      %p89 = pneg %p83
      %p90 = scmp.eq.s32.totalorder %s16, 2
      %p91 = por %p89, %p90
      %p92 = scmp.ne.s32.totalorder %s84, %s87
      %p93 = scmp.eq.s32.totalorder %s16, 0
      %p94 = por %p92, %p93
      %p95 = scmp.ne.s32.totalorder %s84, %s87
      %p96 = scmp.eq.s32.totalorder %s21, 2
      %p97 = por %p95, %p96
      %p98 = scmp.ne.s32.totalorder %s87, %s88
      %p99 = scmp.eq.s32.totalorder %s21, 0
      %p100 = por %p98, %p99
      %p101 = scmp.ne.s32.totalorder %s87, %s88
      %p102 = scmp.eq.s32.totalorder %s22, 2
      %p103 = por %p101, %p102
      %p105 = scmp.ne.s32.totalorder %s88, %s104
      %p106 = scmp.eq.s32.totalorder %s22, 0
      %p107 = por %p105, %p106
      %s108 = ssub.s32 %s23, %s49
      %s109 = ssub.s32 %s25, %s41
      %s110 = sor.u32 %s108, %s109
      %p111 = scmp.eq.s32.totalorder %s110, 0
      %s113 = sadd.s32 %s112, 1
      %s114 = scalar_select %p111, %s112, %s113
      %p117 = pneg %p111
      %p118 = scmp.eq.s32.totalorder %s16, 2
      %p119 = por %p117, %p118
      %p120 = scmp.ne.s32.totalorder %s112, %s115
      %p121 = scmp.eq.s32.totalorder %s16, 0
      %p122 = por %p120, %p121
      %p123 = scmp.ne.s32.totalorder %s112, %s115
      %p124 = scmp.eq.s32.totalorder %s21, 2
      %p125 = por %p123, %p124
      %p126 = scmp.ne.s32.totalorder %s115, %s116
      %p127 = scmp.eq.s32.totalorder %s21, 0
      %p128 = por %p126, %p127
      %p129 = scmp.ne.s32.totalorder %s115, %s116
      %p130 = scmp.eq.s32.totalorder %s22, 2
      %p131 = por %p129, %p130
      %p133 = scmp.ne.s32.totalorder %s116, %s132
      %p134 = scmp.eq.s32.totalorder %s22, 0
      %p135 = por %p133, %p134
      %s136 = ssub.s32 %s23, %s49
      %s137 = ssub.s32 %s24, %s45
      %s138 = sor.u32 %s136, %s137
      %s139 = ssub.s32 %s25, %s41
      %s140 = sor.u32 %s138, %s139
      %p141 = scmp.eq.s32.totalorder %s140, 0
      %s143 = sadd.s32 %s142, 1
      %s144 = scalar_select %p141, %s142, %s143
      %p147 = pneg %p141
      %p148 = scmp.eq.s32.totalorder %s16, 2
      %p149 = por %p147, %p148
      %p150 = scmp.ne.s32.totalorder %s142, %s145
      %p151 = scmp.eq.s32.totalorder %s16, 0
      %p152 = por %p150, %p151
      %p153 = scmp.ne.s32.totalorder %s142, %s145
      %p154 = scmp.eq.s32.totalorder %s21, 2
      %p155 = por %p153, %p154
      %p156 = scmp.ne.s32.totalorder %s145, %s146
      %p157 = scmp.eq.s32.totalorder %s21, 0
      %p158 = por %p156, %p157
      %p159 = scmp.ne.s32.totalorder %s145, %s146
      %p160 = scmp.eq.s32.totalorder %s22, 2
      %p161 = por %p159, %p160
      %p163 = scmp.ne.s32.totalorder %s146, %s162
      %p164 = scmp.eq.s32.totalorder %s22, 0
      %p165 = por %p163, %p164
      %p166 = scmp.le.s32.totalorder 1, %s16
      %p167 = scmp.lt.s32.totalorder %s16, 4
      %p168 = pnand %p166, %p167
      %p169 = pneg %p168
      // Predicated region
      $region9: #{tpu_custom_call.1} parent=5 // pred_check
        _
      $region10: #{tpu_custom_call.1} parent=5 // pred_check_branch
        %171 = sbr.rel (%p168) target = $region12
      $region11: #{tpu_custom_call.1} parent=5 // pred_region
        %s172 = ssub.s32 %s16, 1
        // Predicated region
        $region13: #{tpu_custom_call.1} parent=11 // pred_check
          %p173 = pneg %p70
        $region14: #{tpu_custom_call.1} parent=11 // pred_check_branch
          %175 = sbr.rel (%p173) target = $region16
        $region15: #{tpu_custom_call.1} parent=11 // pred_region
          %s176 = smul.u32 2, %s28
          %s178 = ssub.s32 256, 256
          %179 = vsyncadd [#allocation4], %s178
          %s180 = sadd.s32 %s30, %s176
          %s181 = smul.addr %s180, 128
          %s182 = scalar_lea.hbm %s0, %s181
          %s183 = sshll.u32 [#allocation3], 4
          %s184 = int_to_ptr.vmem [resolvable:$true] %s183
          %189 = dma.hbm_to_vmem [thread:$0]  %s182, 256, %s184, [#allocation4], 128, 128, 8
        $region16: #{tpu_custom_call.1} parent=11 // pred_fallthru
          _
      $region12: #{tpu_custom_call.1} parent=5 // pred_fallthru
        _
      %p190 = scmp.lt.s32.totalorder %s16, 3
      // Predicated region
      $region17: #{tpu_custom_call.1} parent=5 // pred_check
        %p191 = pneg %p190
      $region18: #{tpu_custom_call.1} parent=5 // pred_check_branch
        %193 = sbr.rel (%p191) target = $region20
      $region19: #{tpu_custom_call.1} parent=5 // pred_region
        // Predicated region
        $region21: #{tpu_custom_call.1} parent=19 // pred_check
          %p194 = pneg %p94
        $region22: #{tpu_custom_call.1} parent=19 // pred_check_branch
          %196 = sbr.rel (%p194) target = $region24
        $region23: #{tpu_custom_call.1} parent=19 // pred_region
          %s197 = sand.u32 %s84, 1
          %s198 = scalar_lea.sflag [#allocation7], %s197
          %s199 = sand.u32 %s84, 1
          %s200 = smul.addr %s199, 32
          %s201 = scalar_lea.vmem [#allocation6], %s200
          %s202 = smul.u32 4, %s26
          %s204 = ssub.s32 512, 512
          %205 = vsyncadd %s198, %s204
          %s206 = sadd.s32 %s25, %s202
          %s207 = smul.addr %s23, 4
          %s208 = sadd.s32 %s206, %s207
          %s209 = smul.addr %s208, 128
          %s210 = scalar_lea.hbm %s1, %s209
          %s211 = sshll.u32 %s201, 4
          %s212 = int_to_ptr.vmem [resolvable:$true] %s211
          %217 = dma.hbm_to_vmem [thread:$0]  %s210, 512, %s212, %s198, 128, 128, 8
        $region24: #{tpu_custom_call.1} parent=19 // pred_fallthru
          _
        // Predicated region
        $region25: #{tpu_custom_call.1} parent=19 // pred_check
          %p218 = pneg %p122
        $region26: #{tpu_custom_call.1} parent=19 // pred_check_branch
          %220 = sbr.rel (%p218) target = $region28
        $region27: #{tpu_custom_call.1} parent=19 // pred_region
          %p221 = scmp.lt.s32.totalorder %s23, 2
          %s222 = scalar_select %p221, %s23, 2
          %p223 = scmp.lt.s32.totalorder %s25, 0
          %s224 = scalar_select %p223, %s25, 0
          %s225 = sadd.s32 %s224, %s222
          %s226 = scalar_lea.vmem %s2, %s225
        $region28: #{tpu_custom_call.1} parent=19 // pred_fallthru
          _
      $region20: #{tpu_custom_call.1} parent=5 // pred_fallthru
        _
      %p227 = scmp.le.s32.totalorder 1, %s16
      %p228 = scmp.lt.s32.totalorder %s16, 4
      %p229 = pnand %p227, %p228
      %p230 = pneg %p229
      // Predicated region
      $region29: #{tpu_custom_call.1} parent=5 // pred_check
        _
      $region30: #{tpu_custom_call.1} parent=5 // pred_check_branch
        %232 = sbr.rel (%p229) target = $region32
      $region31: #{tpu_custom_call.1} parent=5 // pred_region
        %s233 = ssub.s32 %s16, 1
        // Predicated region
        $region33: #{tpu_custom_call.1} parent=31 // pred_check
          %p234 = pneg %p70
        $region34: #{tpu_custom_call.1} parent=31 // pred_check_branch
          %236 = sbr.rel (%p234) target = $region36
        $region35: #{tpu_custom_call.1} parent=31 // pred_region
          %237 = dma.done [#allocation4], 256
        $region36: #{tpu_custom_call.1} parent=31 // pred_fallthru
          _
        %s238 = sand.u32 %s87, 1
        %s239 = scalar_lea.sflag [#allocation7], %s238
        %s240 = sand.u32 %s87, 1
        %s241 = smul.addr %s240, 32
        %s242 = scalar_lea.vmem [#allocation6], %s241
        // Predicated region
        $region37: #{tpu_custom_call.1} parent=31 // pred_check
          %p243 = pneg %p100
        $region38: #{tpu_custom_call.1} parent=31 // pred_check_branch
          %245 = sbr.rel (%p243) target = $region40
        $region39: #{tpu_custom_call.1} parent=31 // pred_region
          %246 = dma.done %s239, 512
        $region40: #{tpu_custom_call.1} parent=31 // pred_fallthru
          _
        %p247 = pneg %p70
        %p248 = pneg %p67
        %s249 = sand.u32 %s87, 1
        %s250 = scalar_lea.sflag [#allocation7], %s249
        %s251 = sand.u32 %s87, 1
        %s252 = smul.addr %s251, 32
        %s253 = scalar_lea.vmem [#allocation6], %s252
        %p254 = pneg %p100
        %p255 = pneg %p97
        %p256 = scmp.lt.s32.totalorder %s27, 2
        %s257 = scalar_select %p256, %s27, 2
        %p258 = scmp.lt.s32.totalorder %s29, 0
        %s259 = scalar_select %p258, %s29, 0
        %s260 = sadd.s32 %s259, %s257
        %s261 = scalar_lea.vmem %s2, %s260
        %p262 = pneg %p128
        %p263 = pneg %p125
        %p264 = pneg %p158
        %p265 = pneg %p155
        %s266 = sand.u32 %s145, 1
        %s267 = scalar_lea.sflag [#allocation5], %s266
        %s268 = sand.u32 %s145, 1
        %s269 = smul.addr %s268, 16
        %s270 = scalar_lea.vmem [#allocation8], %s269
        %s271 = smul.u32 2, %s28
        %s272 = smul.u32 4, %s30
        %p273 = scmp.lt.s32.totalorder %s27, 2
        %s274 = scalar_select %p273, %s27, 2
        %p275 = scmp.lt.s32.totalorder %s29, 0
        %s276 = scalar_select %p275, %s29, 0
        %s277 = sadd.s32 %s276, %s274
        %s278 = scalar_lea.vmem %s2, %s277
        %s279 = smul.u32 2, %s28
        %p280 = scmp.eq.s32.totalorder %s30, 0
        // Predicated region
        $region41: #{tpu_custom_call.1} parent=31 // pred_check
          %p281 = pneg %p280
        $region42: #{tpu_custom_call.1} parent=31 // pred_check_branch
          %283 = sbr.rel (%p281) target = $region44
        $region43: #{tpu_custom_call.1} parent=31 // pred_region
          %vm284 = vcmask 261120
          %285 = vst.msk [vmem:[#allocation2] sm:$0xff] %vm284, 0.0
          %286 = vst.msk [vmem:[#allocation2 + $0x8] sm:$0xff] %vm284, 0.0
        $region44: #{tpu_custom_call.1} parent=31 // pred_fallthru
          _
        %v287 = vld [vmem:[#allocation2] sm:$0xff]
        %v288 = vld [vmem:[#allocation2 + $0x8] sm:$0xff]
        %v289 = vld [vmem:[#allocation3] sm:$0xff]
        %v290 = vld [vmem:[#allocation3 + $0x8] sm:$0xff]
        %v291 = vld [vmem:[%s242] sm:$0xff]
        %v292 = vld [vmem:[%s242 + $0x8] sm:$0xff]
        %v293 = vld [vmem:[%s242 + $0x10] sm:$0xff]
        %v294 = vld [vmem:[%s242 + $0x18] sm:$0xff]
        %vm295 = vcmask 261120
        %v297 = vsel %vm295, %v289, 0
        %v300 = vsel %vm295, %v290, 0
        %302 = vmatprep.subr.mxu0 0.0
        %303 = vmatpush1.msra.mxu0 0.0
        %304 = vmatprep.subr.mxu0 0.0
        %305 = vmatpush1.msra.mxu0 0.0
        %306 = vmatprep.subr.mxu0 0.0
        %307 = vmatpush1.msra.mxu0 0.0
        %308 = vmatprep.subr.mxu0 0.0
        %309 = vmatpush1.msra.mxu0 0.0
        %310 = vmatprep.subr.mxu0 0.0
        %311 = vmatpush1.msra.mxu0 0.0
        %312 = vmatprep.subr.mxu0 0.0
        %313 = vmatpush1.msra.mxu0 0.0
        %314 = vmatprep.subr.mxu0 0.0
        %315 = vmatpush1.msra.mxu0 0.0
        %316 = vmatprep.subr.mxu0 0.0
        %317 = vmatpush1.msra.mxu0 0.0
        %318 = vmatprep.subr.mxu0 0.0
        %319 = vmatpush1.msra.mxu0 0.0
        %320 = vmatprep.subr.mxu0 0.0
        %321 = vmatpush1.msra.mxu0 0.0
        %322 = vmatprep.subr.mxu0 0.0
        %323 = vmatpush1.msra.mxu0 0.0
        %324 = vmatprep.subr.mxu0 0.0
        %325 = vmatpush1.msra.mxu0 0.0
        %326 = vmatprep.subr.mxu0 0.0
        %327 = vmatpush1.msra.mxu0 %v294
        %328 = vmatprep.subr.mxu0 0.0
        %329 = vmatpush1.msra.mxu0 %v293
        %330 = vmatprep.subr.mxu0 0.0
        %331 = vmatpush1.msra.mxu0 %v292
        %332 = vmatprep.subr.mxu0 0.0
        %333 = vmatpush1.msra.mxu0 %v291
        %334 = vmatprep.subr.mxu0 0.0
        %335 = vmatpush2.msra.mxu0 0.0
        %336 = vmatprep.subr.mxu0 0.0
        %337 = vmatpush2.msra.mxu0 0.0
        %338 = vmatprep.subr.mxu0 0.0
        %339 = vmatpush2.msra.mxu0 0.0
        %340 = vmatprep.subr.mxu0 0.0
        %341 = vmatpush2.msra.mxu0 0.0
        %342 = vmatprep.subr.mxu0 0.0
        %343 = vmatpush2.msra.mxu0 0.0
        %344 = vmatprep.subr.mxu0 0.0
        %345 = vmatpush2.msra.mxu0 0.0
        %346 = vmatprep.subr.mxu0 0.0
        %347 = vmatpush2.msra.mxu0 0.0
        %348 = vmatprep.subr.mxu0 0.0
        %349 = vmatpush2.msra.mxu0 0.0
        %350 = vmatprep.subr.mxu0 0.0
        %351 = vmatpush2.msra.mxu0 0.0
        %352 = vmatprep.subr.mxu0 0.0
        %353 = vmatpush2.msra.mxu0 0.0
        %354 = vmatprep.subr.mxu0 0.0
        %355 = vmatpush2.msra.mxu0 0.0
        %356 = vmatprep.subr.mxu0 0.0
        %357 = vmatpush2.msra.mxu0 0.0
        %358 = vmatprep.subr.mxu0 0.0
        %359 = vmatpush2.msra.mxu0 0.0
        %360 = vmatprep.subr.mxu0 0.0
        %361 = vmatpush2.msra.mxu0 0.0
        %362 = vmatprep.subr.mxu0 0.0
        %363 = vmatpush2.msra.mxu0 0.0
        %364 = vmatprep.subr.mxu0 0.0
        %365 = vmatpush2.msra.mxu0 0.0
        %366 = vmatprep.mubr.f32.mxu0 0.0
        %367 = vmatmul.mubr.f32.gmra.mxu0 %v297
        %v368 = vpop.f32.mrf.mxu0
        %v369 = vadd.f32 0.0, %v368
        %v370 = vpop.f32.mrf.mxu0
        %371 = vmatprep.mubr.f32.mxu0 0.0
        %372 = vmatmul.mubr.f32.gmra.mxu0 %v300
        %v373 = vpop.f32.mrf.mxu0
        %v374 = vadd.f32 0.0, %v373
        %v375 = vpop.f32.mrf.mxu0
        %376 = vdwg.mxu0
        %v377 = vadd.f32 %v287, %v369
        %v378 = vadd.f32 %v288, %v374
        %379 = vst.msk [vmem:[#allocation2] sm:$0xff] %vm295, %v377
        %380 = vst.msk [vmem:[#allocation2 + $0x8] sm:$0xff] %vm295, %v378
        // Predicated region
        $region45: #{tpu_custom_call.1} parent=31 // pred_check
          %p381 = pneg %p280
        $region46: #{tpu_custom_call.1} parent=31 // pred_check_branch
          %383 = sbr.rel (%p381) target = $region48
        $region47: #{tpu_custom_call.1} parent=31 // pred_region
          %v384 = vld [vmem:[#allocation2] sm:$0xff]
          %v385 = vld [vmem:[#allocation2 + $0x8] sm:$0xff]
          %v386 = vld [vmem:[%s278] sm:$0x1]
          %v388 = vlaneseq
          %v389 = vshrl.u32 %v388, 7
          %v390 = vsub.s32 0, %v389
          %v391 = vrot.slane %v386, %v390
          %v393 = vadd.f32 %v384, %v391
          %v394 = vadd.f32 %v385, %v391
          %395 = vst.msk [vmem:[%s270] sm:$0xff] %vm295, %v393
          %396 = vst.msk [vmem:[%s270 + $0x8] sm:$0xff] %vm295, %v394
        $region48: #{tpu_custom_call.1} parent=31 // pred_fallthru
          _
        %s397 = sand.u32 %s145, 1
        %s398 = scalar_lea.sflag [#allocation5], %s397
        %s399 = sand.u32 %s145, 1
        %s400 = smul.addr %s399, 16
        %s401 = scalar_lea.vmem [#allocation8], %s400
        // Predicated region
        $region49: #{tpu_custom_call.1} parent=31 // pred_check
          %p402 = pneg %p155
        $region50: #{tpu_custom_call.1} parent=31 // pred_check_branch
          %404 = sbr.rel (%p402) target = $region52
        $region51: #{tpu_custom_call.1} parent=31 // pred_region
          %s405 = smul.u32 2, %s28
          %s407 = ssub.s32 256, 256
          %408 = vsyncadd %s398, %s407
          %s409 = sadd.s32 %s29, %s405
          %s410 = smul.addr %s27, 2
          %s411 = sadd.s32 %s409, %s410
          %s412 = smul.addr %s411, 128
          %s413 = scalar_lea.hbm %s3, %s412
          %s414 = sshll.u32 %s401, 4
          %s415 = int_to_ptr.vmem [resolvable:$true] %s414
          %420 = dma.vmem_to_hbm [thread:$0]  %s415, 256, %s413, %s398, 128, 128, 8
        $region52: #{tpu_custom_call.1} parent=31 // pred_fallthru
          _
      $region32: #{tpu_custom_call.1} parent=5 // pred_fallthru
        _
      %p421 = scmp.le.s32.totalorder 2, %s16
      // Predicated region
      $region53: #{tpu_custom_call.1} parent=5 // pred_check
        %p422 = pneg %p421
      $region54: #{tpu_custom_call.1} parent=5 // pred_check_branch
        %424 = sbr.rel (%p422) target = $region56
      $region55: #{tpu_custom_call.1} parent=5 // pred_region
        %s425 = ssub.s32 %s16, 2
        // Predicated region
        $region57: #{tpu_custom_call.1} parent=55 // pred_check
          %p426 = pneg %p161
        $region58: #{tpu_custom_call.1} parent=55 // pred_check_branch
          %428 = sbr.rel (%p426) target = $region60
        $region59: #{tpu_custom_call.1} parent=55 // pred_region
          %s429 = sand.u32 %s146, 1
          %s430 = scalar_lea.sflag [#allocation5], %s429
          %s431 = sand.u32 %s146, 1
          %s432 = smul.addr %s431, 16
          %s433 = scalar_lea.vmem [#allocation8], %s432
          %434 = dma.done %s430, 256
        $region60: #{tpu_custom_call.1} parent=55 // pred_fallthru
          _
      $region56: #{tpu_custom_call.1} parent=5 // pred_fallthru
        _
    $region6: #{tpu_custom_call.1} parent=1 // loop_footer
      %s20 = sadd.s32 1, %s16
    $region7: #{tpu_custom_call.1} parent=1 // loop_footer_branch
      %15 = sbr.rel target = $region3
    $region8: #{tpu_custom_call.1} parent=1 // loop_exit
      _
    %435 = vsyncpa [#allocation4], 1
    %s436 = scalar_lea.sflag [#allocation4], 1
    %437 = vsyncpa %s436, 1
    %438 = vsyncpa [#allocation7], 1
    %s439 = scalar_lea.sflag [#allocation7], 1
    %440 = vsyncpa %s439, 1
    %441 = vsyncpa [#allocation5], 1
    %s442 = scalar_lea.sflag [#allocation5], 1
    %443 = vsyncpa %s442, 1

</llo_original>
